<compile_context>
chip_gen: v6e
topology: v6e:2x2x1
jax: 0.10.0
libtpu: 0.0.40
codegen_flags: <defaults>
</compile_context>

<pallas_src>
import functools

import jax
import jax.numpy as jnp
from jax import lax
from jax.experimental import pallas as pl
from jax.experimental.pallas import tpu as pltpu


# --------------- pass 1: channel-wise mean / max reduction (lane-dense) ---------------

def _chan_reduce_kernel(x_ref, m_ref, *, inv_c: float):
    # x_ref: (1, C, TS) block of x (native dtype); m_ref: (1, 2, TS) f32 maps.
    x = x_ref[...]
    # Mean accumulated in f32; max computed in native dtype (exact), cast on store.
    m_ref[:, 0, :] = jnp.sum(x.astype(jnp.float32), axis=1) * inv_c
    m_ref[:, 1, :] = jnp.max(x, axis=1).astype(jnp.float32)


# --------------- pass 2: k x k conv (2 -> 1 channel, zero pad) + sigmoid --------------

def _conv_sigmoid_kernel(mp_ref, w_ref, o_ref, *, k: int, H: int, W: int):
    # mp_ref: (1, 2, H+2p, W+2p) zero-padded f32 maps (channel 0 = avg, 1 = max)
    # w_ref : (2*k*k,) f32 Conv2d(2,1,k) weight flattened as weight[0, c, i, j]
    # o_ref : (1, 1, H, W) output attention map
    planes = (mp_ref[0, 0], mp_ref[0, 1])          # each (H+2p, W+2p), f32
    y = jnp.zeros((H, W), jnp.float32)
    for c in range(2):
        pc = planes[c]
        for i in range(k):
            for j in range(k):
                y = y + w_ref[c * k * k + i * k + j] * pc[i:i + H, j:j + W]
    o_ref[0, 0] = jax.nn.sigmoid(y).astype(o_ref.dtype)


# ------------------------------------ wrapper -----------------------------------------

def spatial_attention_pallas(x: jax.Array, conv_weight: jax.Array) -> jax.Array:
    """x: (B, C, H, W); conv_weight: (1, 2, k, k) Conv2d(2, 1, k, bias=False) weight."""
    B, C, H, W = x.shape
    k = int(conv_weight.shape[-1])
    pad = (k - 1) // 2

    # ---- pass 1: lane-dense channel reduction -> (B, 2, HW) f32 maps ----
    HW = H * W
    HWp = ((HW + 127) // 128) * 128                 # pad flattened spatial axis to lanes
    x_flat = x.reshape(B, C, HW)
    if HWp != HW:
        x_flat = jnp.pad(x_flat, ((0, 0), (0, 0), (0, HWp - HW)))

    itemsize = x.dtype.itemsize
    ts = 128                                        # always divides HWp
    for cand in (2048, 1024, 512, 256, 128):        # biggest tile that divides & fits VMEM
        if HWp % cand == 0 and C * cand * itemsize <= (4 << 20):
            ts = cand
            break
    n_s = HWp // ts

    # Explicit VMEM budget: double-buffered input block + (tiny) output block + headroom.
    blk_in = C * ts * itemsize
    blk_out = 2 * ts * 4
    vmem_limit = int(min(max(2 * (blk_in + blk_out) + (8 << 20), 16 << 20), 48 << 20))

    maps_flat = pl.pallas_call(
        functools.partial(_chan_reduce_kernel, inv_c=1.0 / C),
        out_shape=jax.ShapeDtypeStruct((B, 2, HWp), jnp.float32),
        grid_spec=pl.GridSpec(
            grid=(B, n_s),
            in_specs=[pl.BlockSpec((1, C, ts), lambda b, s: (b, 0, s))],
            out_specs=pl.BlockSpec((1, 2, ts), lambda b, s: (b, 0, s)),
        ),
        compiler_params=pltpu.CompilerParams(
            dimension_semantics=("parallel", "parallel"),
            vmem_limit_bytes=vmem_limit,
        ),
    )(x_flat)

    # ---- pass 2: conv(2->1, k x k, zero padding) + sigmoid on the tiny map ----
    maps = maps_flat[:, :, :HW].reshape(B, 2, H, W)
    maps_pad = jnp.pad(maps, ((0, 0), (0, 0), (pad, pad), (pad, pad)))   # zero pad = conv pad
    w_flat = conv_weight.reshape(-1).astype(jnp.float32)                 # (2*k*k,)

    out = pl.pallas_call(
        functools.partial(_conv_sigmoid_kernel, k=k, H=H, W=W),
        out_shape=jax.ShapeDtypeStruct((B, 1, H, W), x.dtype),
        grid_spec=pl.GridSpec(
            grid=(B,),
            in_specs=[
                pl.BlockSpec((1, 2, H + 2 * pad, W + 2 * pad), lambda b: (b, 0, 0, 0)),
                pl.BlockSpec(memory_space=pltpu.SMEM),   # whole flattened weight in SMEM
            ],
            out_specs=pl.BlockSpec((1, 1, H, W), lambda b: (b, 0, 0, 0)),
        ),
        compiler_params=pltpu.CompilerParams(dimension_semantics=("parallel",)),
    )(maps_pad, w_flat)

    return out


# ------------------------------- pure-JAX reference -----------------------------------

def spatial_attention_ref(x: jax.Array, conv_weight: jax.Array) -> jax.Array:
    avg = jnp.mean(x.astype(jnp.float32), axis=1, keepdims=True)
    mx = jnp.max(x.astype(jnp.float32), axis=1, keepdims=True)
    m = jnp.concatenate([avg, mx], axis=1)                      # (B, 2, H, W)
    k = conv_weight.shape[-1]
    pad = (k - 1) // 2
    y = lax.conv_general_dilated(
        m, conv_weight.astype(jnp.float32),
        window_strides=(1, 1),
        padding=[(pad, pad), (pad, pad)],
        dimension_numbers=("NCHW", "OIHW", "NCHW"),
    )
    return jax.nn.sigmoid(y).astype(x.dtype)


if __name__ == "__main__":
    key = jax.random.PRNGKey(0)
    kx, kw = jax.random.split(key)

    B, C, H, W = 2, 4, 16, 16
    k_size = 7                                   # CBAM default (3 or 7)

    x = jax.random.normal(kx, (B, C, H, W), dtype=jnp.float32)
    # Conv2d(2, 1, k, bias=False) weight, PyTorch-style uniform fan-in init.
    fan_in = 2 * k_size * k_size
    bound = 1.0 / fan_in ** 0.5
    conv_weight = jax.random.uniform(
        kw, (1, 2, k_size, k_size), dtype=jnp.float32, minval=-bound, maxval=bound
    )

    out = spatial_attention_pallas(x, conv_weight)
    out = jax.block_until_ready(out)

    ref = spatial_attention_ref(x, conv_weight)
    assert out.shape == (B, 1, H, W)
    assert jnp.allclose(out, ref, atol=1e-5, rtol=1e-5), "mismatch vs reference"

    print("KERNEL_OK")
</pallas_src>

<mosaic_0001>
module attributes {stable_mosaic.version = 11 : i64} {
  func.func @_chan_reduce_kernel(%arg0: i32, %arg1: i32, %arg2: memref<1x4x256xf32, #tpu.memory_space<vmem>>, %arg3: memref<1x2x256xf32, #tpu.memory_space<vmem>>) attributes {dimension_semantics = [#tpu.dimension_semantics<parallel>, #tpu.dimension_semantics<parallel>], iteration_bounds = array<i64: 2, 1>, scalar_prefetch = 0 : i64, scratch_operands = 0 : i64, tpu.core_type = #tpu.core_type<tc>, window_params = [{transform_indices = @transform_0, window_bounds = array<i64: 1, 4, 256>}, {transform_indices = @transform_1, window_bounds = array<i64: 1, 2, 256>}]} {
    %c0 = arith.constant 0 : index
    %c0_0 = arith.constant 0 : index
    %c0_1 = arith.constant 0 : index
    %0 = vector.load %arg2[%c0, %c0_0, %c0_1] : memref<1x4x256xf32, #tpu.memory_space<vmem>>, vector<1x4x256xf32>
    %cst = arith.constant dense<0.000000e+00> : vector<1x256xf32>
    %1 = vector.multi_reduction <add>, %0, %cst [1] : vector<1x4x256xf32> to vector<1x256xf32>
    %cst_2 = arith.constant 2.500000e-01 : f32
    %2 = vector.broadcast %cst_2 : f32 to vector<1x256xf32>
    %3 = arith.mulf %1, %2 : vector<1x256xf32>
    %c0_3 = arith.constant 0 : index
    %c0_4 = arith.constant 0 : index
    %c0_5 = arith.constant 0 : index
    %4 = vector.load %arg3[%c0_3, %c0_4, %c0_5] : memref<1x2x256xf32, #tpu.memory_space<vmem>>, vector<1x1x256xf32>
    %5 = vector.shape_cast %4 : vector<1x1x256xf32> to vector<1x256xf32>
    %6 = vector.shape_cast %3 : vector<1x256xf32> to vector<1x1x256xf32>
    tpu.vector_store %arg3[%c0_3, %c0_4, %c0_5], %6 {strides = array<i32>} : memref<1x2x256xf32, #tpu.memory_space<vmem>>, vector<1x1x256xf32>,
    %cst_6 = arith.constant dense<0xFF800000> : vector<1x256xf32>
    %7 = vector.multi_reduction <maximumf>, %0, %cst_6 [1] : vector<1x4x256xf32> to vector<1x256xf32>
    %c0_7 = arith.constant 0 : index
    %c1 = arith.constant 1 : index
    %c0_8 = arith.constant 0 : index
    %8 = vector.load %arg3[%c0_7, %c1, %c0_8] : memref<1x2x256xf32, #tpu.memory_space<vmem>>, vector<1x1x256xf32>
    %9 = vector.shape_cast %8 : vector<1x1x256xf32> to vector<1x256xf32>
    %10 = vector.shape_cast %7 : vector<1x256xf32> to vector<1x1x256xf32>
    tpu.vector_store %arg3[%c0_7, %c1, %c0_8], %10 {strides = array<i32>} : memref<1x2x256xf32, #tpu.memory_space<vmem>>, vector<1x1x256xf32>,
    return
  }
  func.func @transform_0(%arg0: i32, %arg1: i32) -> (i32, i32, i32) {
    %c0_i32 = arith.constant 0 : i32
    %c0_i32_0 = arith.constant 0 : i32
    return %arg0, %c0_i32, %arg1 : i32, i32, i32
  }
  func.func @transform_1(%arg0: i32, %arg1: i32) -> (i32, i32, i32) {
    %c0_i32 = arith.constant 0 : i32
    %c0_i32_0 = arith.constant 0 : i32
    return %arg0, %c0_i32, %arg1 : i32, i32, i32
  }
}

</mosaic_0001>

<llo_original>
// kernel: tpu_custom_call.1
$region0: #{tpu_custom_call.1}
  #allocation0 [shape = 'u32[]', space=smem, size = 0x4, offset = 0x4, fixed_abs, tag = 'smem constant byte address 0x4 - core index']
  #allocation1 [shape = 'u32[144,128]{1,0:T(1,128)}', space=vmem, size = 0x12000, scoped, tag = 'internal scratch']
  %s0 = inlined_call_operand.hbm [shape: f32[2,4,256], index: 0, kind: input, shape index: {}]
  %s1 = inlined_call_operand.hbm [shape: f32[2,2,256], index: 1, kind: output, shape index: {}]
  %s2 = sld [smem:[#allocation0]]
  $region41: #{tpu_custom_call.1} parent=0
    _
  %s4 = ssub.s32 1, %s2
  %s5 = scalar_select 0, %s4, %s2
  $region1: #{tpu_custom_call.1} parent=0
    #allocation2 [shape = 'u8[8192]{0}', space=vmem, size = 0x2000, scoped, tag = 'input window, operand 0']
    #allocation3 [shape = 's32[2]{0}', space=sflag, size = 0x8, scoped, tag = 'scoped memory for tpu_custom_call.1']
    #allocation4 [shape = 's32[2]{0}', space=sflag, size = 0x8, scoped, tag = 'scoped memory for tpu_custom_call.1']
    #allocation5 [shape = 'u8[4096]{0}', space=vmem, size = 0x1000, scoped, tag = 'output window, operand 0']
    %6 = vsyncpa [#allocation3], 0
    %s7 = scalar_lea.sflag [#allocation3], 1
    %8 = vsyncpa %s7, 0
    %9 = vsyncpa [#allocation4], 0
    %s10 = scalar_lea.sflag [#allocation4], 1
    %11 = vsyncpa %s10, 0
    loop: start=0, step=1, limit=4
    $region2: #{tpu_custom_call.1} parent=1 // loop_pre_header
      _
    $region3: #{tpu_custom_call.1} parent=1 // loop_header
      %s13 = sphi 0, %s17
      %p14 = scmp.ge.s32.totalorder %s13, 4
      %s20 = sphi 0, %s32
      %s21 = sphi 0, %s28
      %s22 = sphi 0, %s20
      %s23 = sphi 0, %s21
      %s24 = sphi 0, %s22
      %s25 = sphi 0, %s23
      %s37 = sphi 0, %s39
      %s40 = sphi 0, %s37
      %s41 = sphi 0, %s40
      %s57 = sphi 0, %s41
      %s65 = sphi 0, %s67
      %s68 = sphi 0, %s65
      %s69 = sphi 0, %s68
      %s85 = sphi 0, %s69
    $region4: #{tpu_custom_call.1} parent=1 // loop_header_branch
      %16 = sbr.rel (%p14) target = $region8
    $region5: #{tpu_custom_call.1} parent=1 // loop_body
      %s18 = ssub.s32 %s13, 1
      %s19 = ssub.s32 %s13, 2
      %s26 = sadd.s32 1, %s21
      %p27 = scmp.ge.s32.totalorder %s26, 1
      %s28 = scalar_select %p27, 0, %s26
      %s29 = sadd.s32 1, %s20
      %s30 = scalar_select %p27, %s29, %s20
      %p31 = scmp.ge.s32.totalorder %s30, 2
      %s32 = scalar_select %p31, 0, %s30
      %s33 = ssub.s32 %s20, %s32
      %s34 = ssub.s32 %s21, %s28
      %s35 = sor.u32 %s33, %s34
      %p36 = scmp.eq.s32.totalorder %s35, 0
      %s38 = sadd.s32 %s37, 1
      %s39 = scalar_select %p36, %s37, %s38
      %p42 = pneg %p36
      %p43 = scmp.eq.s32.totalorder %s13, 1
      %p44 = por %p42, %p43
      %p45 = scmp.ne.s32.totalorder %s37, %s40
      %p46 = scmp.eq.s32.totalorder %s13, 0
      %p47 = por %p45, %p46
      %p48 = scmp.ne.s32.totalorder %s37, %s40
      %p49 = scmp.eq.s32.totalorder %s18, 1
      %p50 = por %p48, %p49
      %p51 = scmp.ne.s32.totalorder %s40, %s41
      %p52 = scmp.eq.s32.totalorder %s18, 0
      %p53 = por %p51, %p52
      %p54 = scmp.ne.s32.totalorder %s40, %s41
      %p55 = scmp.eq.s32.totalorder %s19, 1
      %p56 = por %p54, %p55
      %p58 = scmp.ne.s32.totalorder %s41, %s57
      %p59 = scmp.eq.s32.totalorder %s19, 0
      %p60 = por %p58, %p59
      %s61 = ssub.s32 %s20, %s32
      %s62 = ssub.s32 %s21, %s28
      %s63 = sor.u32 %s61, %s62
      %p64 = scmp.eq.s32.totalorder %s63, 0
      %s66 = sadd.s32 %s65, 1
      %s67 = scalar_select %p64, %s65, %s66
      %p70 = pneg %p64
      %p71 = scmp.eq.s32.totalorder %s13, 1
      %p72 = por %p70, %p71
      %p73 = scmp.ne.s32.totalorder %s65, %s68
      %p74 = scmp.eq.s32.totalorder %s13, 0
      %p75 = por %p73, %p74
      %p76 = scmp.ne.s32.totalorder %s65, %s68
      %p77 = scmp.eq.s32.totalorder %s18, 1
      %p78 = por %p76, %p77
      %p79 = scmp.ne.s32.totalorder %s68, %s69
      %p80 = scmp.eq.s32.totalorder %s18, 0
      %p81 = por %p79, %p80
      %p82 = scmp.ne.s32.totalorder %s68, %s69
      %p83 = scmp.eq.s32.totalorder %s19, 1
      %p84 = por %p82, %p83
      %p86 = scmp.ne.s32.totalorder %s69, %s85
      %p87 = scmp.eq.s32.totalorder %s19, 0
      %p88 = por %p86, %p87
      %p89 = scmp.le.s32.totalorder 1, %s13
      %p90 = scmp.lt.s32.totalorder %s13, 3
      %p91 = pnand %p89, %p90
      %p92 = pneg %p91
      // Predicated region
      $region9: #{tpu_custom_call.1} parent=5 // pred_check
        _
      $region10: #{tpu_custom_call.1} parent=5 // pred_check_branch
        %94 = sbr.rel (%p91) target = $region12
      $region11: #{tpu_custom_call.1} parent=5 // pred_region
        %s95 = ssub.s32 %s13, 1
      $region12: #{tpu_custom_call.1} parent=5 // pred_fallthru
        _
      %p96 = scmp.lt.s32.totalorder %s13, 2
      // Predicated region
      $region13: #{tpu_custom_call.1} parent=5 // pred_check
        %p97 = pneg %p96
      $region14: #{tpu_custom_call.1} parent=5 // pred_check_branch
        %99 = sbr.rel (%p97) target = $region16
      $region15: #{tpu_custom_call.1} parent=5 // pred_region
        // Predicated region
        $region17: #{tpu_custom_call.1} parent=15 // pred_check
          %p100 = pneg %p47
        $region18: #{tpu_custom_call.1} parent=15 // pred_check_branch
          %102 = sbr.rel (%p100) target = $region20
        $region19: #{tpu_custom_call.1} parent=15 // pred_region
          %s103 = sand.u32 %s37, 1
          %s104 = scalar_lea.sflag [#allocation3], %s103
          %s105 = sand.u32 %s37, 1
          %s106 = smul.addr %s105, 8
          %s107 = scalar_lea.vmem [#allocation2], %s106
          %s108 = smul.u32 2, %s21
          %s110 = ssub.s32 128, 128
          %111 = vsyncadd %s104, %s110
          %s112 = smul.addr %s20, 2
          %s113 = sadd.s32 %s108, %s112
          %s114 = smul.addr %s113, 64
          %s115 = scalar_lea.hbm %s0, %s114
          %s117 = sshll.u32 %s107, 4
          %s118 = int_to_ptr.vmem [resolvable:$true] %s117
          %120 = dma.hbm_to_vmem [thread:$0]  %s115, 128, %s118, %s104
        $region20: #{tpu_custom_call.1} parent=15 // pred_fallthru
          _
      $region16: #{tpu_custom_call.1} parent=5 // pred_fallthru
        _
      %p121 = scmp.le.s32.totalorder 1, %s13
      %p122 = scmp.lt.s32.totalorder %s13, 3
      %p123 = pnand %p121, %p122
      %p124 = pneg %p123
      // Predicated region
      $region21: #{tpu_custom_call.1} parent=5 // pred_check
        _
      $region22: #{tpu_custom_call.1} parent=5 // pred_check_branch
        %126 = sbr.rel (%p123) target = $region24
      $region23: #{tpu_custom_call.1} parent=5 // pred_region
        %s127 = ssub.s32 %s13, 1
        %s128 = sand.u32 %s40, 1
        %s129 = scalar_lea.sflag [#allocation3], %s128
        %s130 = sand.u32 %s40, 1
        %s131 = smul.addr %s130, 8
        %s132 = scalar_lea.vmem [#allocation2], %s131
        // Predicated region
        $region25: #{tpu_custom_call.1} parent=23 // pred_check
          %p133 = pneg %p53
        $region26: #{tpu_custom_call.1} parent=23 // pred_check_branch
          %135 = sbr.rel (%p133) target = $region28
        $region27: #{tpu_custom_call.1} parent=23 // pred_region
          %136 = dma.done %s129, 128
        $region28: #{tpu_custom_call.1} parent=23 // pred_fallthru
          _
        %s137 = sand.u32 %s40, 1
        %s138 = scalar_lea.sflag [#allocation3], %s137
        %s139 = sand.u32 %s40, 1
        %s140 = smul.addr %s139, 8
        %s141 = scalar_lea.vmem [#allocation2], %s140
        %p142 = pneg %p53
        %p143 = pneg %p50
        %p144 = pneg %p81
        %p145 = pneg %p78
        %s146 = sand.u32 %s68, 1
        %s147 = scalar_lea.sflag [#allocation4], %s146
        %s148 = sand.u32 %s68, 1
        %s149 = smul.addr %s148, 4
        %s150 = scalar_lea.vmem [#allocation5], %s149
        %s151 = smul.u32 2, %s23
        %s152 = smul.u32 2, %s23
        %v153 = vld [vmem:[%s132] sm:$0xff]
        %v155 = vcombine.high %v153, %v153
        %vm157 = vcmask 1043456
        %v158 = vsel %vm157, %v153, 0.0
        %v159 = vrot.slane %v158, 4
        %v160 = vadd.f32 %v158, %v159
        %v161 = vrot.slane %v160, 2
        %v162 = vadd.f32 %v160, %v161
        %v163 = vrot.slane %v162, 1
        %v164 = vadd.f32 %v162, %v163
        %v165 = vsel %vm157, %v155, 0.0
        %v166 = vrot.slane %v165, 4
        %v167 = vadd.f32 %v165, %v166
        %v168 = vrot.slane %v167, 2
        %v169 = vadd.f32 %v167, %v168
        %v170 = vrot.slane %v169, 1
        %v171 = vadd.f32 %v169, %v170
        %v172 = vmul.f32 %v164, 0.25
        %v173 = vmul.f32 %v171, 0.25
        %v176 = vcombine.low %v172, %v173
        %v178 = vunpack.c.l.s4 1966171168
        %v179 = vunpack.c.0.s8 %v178
        %v180 = vlaneseq
        %v181 = vshrl.u32 %v180, 7
        %v182 = vsub.s32 %v179, %v181
        %v183 = vrot.slane %v176, %v182
        %v185 = vunpack.c.l.s4 1966171168
        %v186 = vunpack.c.0.s8 %v185
        %v187 = vlaneseq
        %v188 = vshrl.u32 %v187, 7
        %v189 = vsub.s32 %v186, %v188
        %v190 = vrot.slane %v183, %v189
        %v192 = vlaneseq
        %vm193 = vcmp.ge.s32.totalorder %v192, 0
        %vm194 = vcmp.lt.s32.totalorder %v192, 256
        %vm195 = vmand %vm193, %vm194
        %196 = vst.msk [vmem:[%s150] ss:$2 sm:$0x3] %vm195, %v190
        %v197 = vsel %vm157, %v153, -inf
        %v198 = vrot.slane %v197, 4
        %v199 = vmax.f32 %v197, %v198
        %v200 = vrot.slane %v199, 2
        %v201 = vmax.f32 %v199, %v200
        %v202 = vrot.slane %v201, 1
        %v203 = vmax.f32 %v201, %v202
        %v204 = vsel %vm157, %v155, -inf
        %v205 = vrot.slane %v204, 4
        %v206 = vmax.f32 %v204, %v205
        %v207 = vrot.slane %v206, 2
        %v208 = vmax.f32 %v206, %v207
        %v209 = vrot.slane %v208, 1
        %v210 = vmax.f32 %v208, %v209
        %v213 = vcombine.low %v203, %v210
        %v215 = vunpack.c.l.s4 1966171168
        %v216 = vunpack.c.0.s8 %v215
        %v217 = vlaneseq
        %v218 = vshrl.u32 %v217, 7
        %v219 = vsub.s32 %v216, %v218
        %v220 = vrot.slane %v213, %v219
        %v222 = vunpack.c.l.s4 1966171168
        %v223 = vunpack.c.0.s8 %v222
        %v224 = vlaneseq
        %v225 = vshrl.u32 %v224, 7
        %v226 = vsub.s32 %v223, %v225
        %v227 = vrot.slane %v220, %v226
        %s229 = scalar_lea.vmem %s150, 1 [#allocation5]
        %230 = vst.msk [vmem:[%s229] ss:$2 sm:$0x3] %vm195, %v227
        %s231 = sand.u32 %s68, 1
        %s232 = scalar_lea.sflag [#allocation4], %s231
        %s233 = sand.u32 %s68, 1
        %s234 = smul.addr %s233, 4
        %s235 = scalar_lea.vmem [#allocation5], %s234
        // Predicated region
        $region29: #{tpu_custom_call.1} parent=23 // pred_check
          %p236 = pneg %p78
        $region30: #{tpu_custom_call.1} parent=23 // pred_check_branch
          %238 = sbr.rel (%p236) target = $region32
        $region31: #{tpu_custom_call.1} parent=23 // pred_region
          %s239 = smul.u32 2, %s23
          %s241 = ssub.s32 64, 64
          %242 = vsyncadd %s232, %s241
          %s243 = smul.addr %s22, 2
          %s244 = sadd.s32 %s239, %s243
          %s245 = smul.addr %s244, 32
          %s246 = scalar_lea.hbm %s1, %s245
          %s248 = sshll.u32 %s235, 4
          %s249 = int_to_ptr.vmem [resolvable:$true] %s248
          %251 = dma.vmem_to_hbm [thread:$0]  %s249, 64, %s246, %s232
        $region32: #{tpu_custom_call.1} parent=23 // pred_fallthru
          _
      $region24: #{tpu_custom_call.1} parent=5 // pred_fallthru
        _
      %p252 = scmp.le.s32.totalorder 2, %s13
      // Predicated region
      $region33: #{tpu_custom_call.1} parent=5 // pred_check
        %p253 = pneg %p252
      $region34: #{tpu_custom_call.1} parent=5 // pred_check_branch
        %255 = sbr.rel (%p253) target = $region36
      $region35: #{tpu_custom_call.1} parent=5 // pred_region
        %s256 = ssub.s32 %s13, 2
        // Predicated region
        $region37: #{tpu_custom_call.1} parent=35 // pred_check
          %p257 = pneg %p84
        $region38: #{tpu_custom_call.1} parent=35 // pred_check_branch
          %259 = sbr.rel (%p257) target = $region40
        $region39: #{tpu_custom_call.1} parent=35 // pred_region
          %s260 = sand.u32 %s69, 1
          %s261 = scalar_lea.sflag [#allocation4], %s260
          %s262 = sand.u32 %s69, 1
          %s263 = smul.addr %s262, 4
          %s264 = scalar_lea.vmem [#allocation5], %s263
          %265 = dma.done %s261, 64
        $region40: #{tpu_custom_call.1} parent=35 // pred_fallthru
          _
      $region36: #{tpu_custom_call.1} parent=5 // pred_fallthru
        _
    $region6: #{tpu_custom_call.1} parent=1 // loop_footer
      %s17 = sadd.s32 1, %s13
    $region7: #{tpu_custom_call.1} parent=1 // loop_footer_branch
      %12 = sbr.rel target = $region3
    $region8: #{tpu_custom_call.1} parent=1 // loop_exit
      _
    %266 = vsyncpa [#allocation3], 1
    %s267 = scalar_lea.sflag [#allocation3], 1
    %268 = vsyncpa %s267, 1
    %269 = vsyncpa [#allocation4], 1
    %s270 = scalar_lea.sflag [#allocation4], 1
    %271 = vsyncpa %s270, 1

</llo_original>
